<compile_context>
chip_gen: v6e
topology: v6e:2x2x1
jax: 0.10.0
libtpu: 0.0.40
codegen_flags: <defaults>
</compile_context>

<pallas_src>
import jax
import jax.numpy as jnp
from jax.experimental import pallas as pl
from jax.experimental.pallas import tpu as pltpu

_LANE = 128
_SUBLANE = 8
_MIB = 1024 * 1024


def _round_up(n, m):
    return ((n + m - 1) // m) * m


def _period_head_kernel(x_ref, w1_ref, b1_ref, w2_ref, b2_ref, w3_ref, b3_ref, o_ref):
    # Layer 1: Linear(D_in -> H1p) + ReLU.  Dropout is identity in eval mode.
    # Cast to the weight dtype in-kernel (avoids a separate wrapper cast pass).
    x = x_ref[...].astype(w1_ref.dtype)
    h1 = jnp.dot(x, w1_ref[...], preferred_element_type=jnp.float32) + b1_ref[...]
    h1 = jnp.maximum(h1, 0.0)
    # Layer 2: Linear(H1p -> H2p) + ReLU.
    h2 = jnp.dot(h1.astype(w2_ref.dtype), w2_ref[...],
                 preferred_element_type=jnp.float32) + b2_ref[...]
    h2 = jnp.maximum(h2, 0.0)
    # Layer 3: weights lane-padded to 128 for the MXU; store only the 2 real
    # columns (narrow, masked vst) with the abs() fused in.
    y = jnp.dot(h2.astype(w3_ref.dtype), w3_ref[...],
                preferred_element_type=jnp.float32) + b3_ref[...]
    o_ref[...] = jnp.abs(y[:, : o_ref.shape[1]]).astype(o_ref.dtype)


def period_detection_head_forward(x, params, *, compute_dtype=jnp.bfloat16,
                                  block_batch=None):
    """x: (B, D_in).  params = (w1, b1, w2, b2, w3, b3) with
    w1: (D_in, D_in//2), w2: (D_in//2, D_in//4), w3: (D_in//4, 2), biases 1-D.
    Returns {'period': (B, 1), 'uncertainty': (B, 1)} in f32."""
    w1, b1, w2, b2, w3, b3 = params
    B, D_in = x.shape
    H1, H2, D_out = w1.shape[1], w2.shape[1], w3.shape[1]

    # Lane-dense zero padding of hidden feature dims and the layer-3 weight's
    # output dim (numerically exact: ReLU(0)=0, padded columns never stored).
    H1p = _round_up(H1, _LANE)
    H2p = _round_up(H2, _LANE)
    Dop = _round_up(D_out, _LANE)

    w1p = jnp.pad(w1, ((0, 0), (0, H1p - H1))).astype(compute_dtype)
    b1p = jnp.pad(b1.reshape(1, -1), ((0, 0), (0, H1p - H1))).astype(jnp.float32)
    w2p = jnp.pad(w2, ((0, H1p - H1), (0, H2p - H2))).astype(compute_dtype)
    b2p = jnp.pad(b2.reshape(1, -1), ((0, 0), (0, H2p - H2))).astype(jnp.float32)
    w3p = jnp.pad(w3, ((0, H2p - H2), (0, Dop - D_out))).astype(compute_dtype)
    b3p = jnp.pad(b3.reshape(1, -1), ((0, 0), (0, Dop - D_out))).astype(jnp.float32)

    x_itemsize = x.dtype.itemsize
    w_itemsize = jnp.dtype(compute_dtype).itemsize
    weight_bytes = ((D_in * H1p + H1p * H2p + H2p * Dop) * w_itemsize
                    + (H1p + H2p + Dop) * 4)

    def _footprint(bb):
        # double-buffered x tile + double-buffered narrow output tile
        # + single-buffered resident weights/biases.
        return 2 * bb * D_in * x_itemsize + 2 * bb * D_out * 4 + weight_bytes

    if block_batch is None:
        if B <= 256:
            block_batch = _round_up(B, _SUBLANE)
        else:
            # Large tiles amortize the ~0.35 us/step overhead; keep >= 2 grid
            # steps so v7x's two TensorCores both get work.
            block_batch = min(1024, _round_up(pl.cdiv(B, 2), 256))
            # Stay under ~48 MiB so tiles + weights fit v7x's 64 MiB VMEM.
            while block_batch > 256 and _footprint(block_batch) > 48 * _MIB:
                block_batch //= 2
    block_batch = max(_round_up(block_batch, _SUBLANE), _SUBLANE)

    grid = (pl.cdiv(B, block_batch),)  # ragged last block handled by Pallas
    vmem_limit = int(min(100 * _MIB,
                         max(32 * _MIB, _footprint(block_batch) + 4 * _MIB)))

    cost = pl.CostEstimate(
        flops=2 * B * (D_in * H1p + H1p * H2p + H2p * Dop),
        transcendentals=0,
        bytes_accessed=B * D_in * x_itemsize + weight_bytes + B * D_out * 4,
    )

    resident = dict(pipeline_mode=pl.Buffered(1))  # constant blocks: 1 buffer

    out = pl.pallas_call(
        _period_head_kernel,
        out_shape=jax.ShapeDtypeStruct((B, D_out), jnp.float32),
        grid=grid,
        in_specs=[
            pl.BlockSpec((block_batch, D_in), lambda i: (i, 0)),   # x: batch-tiled
            pl.BlockSpec((D_in, H1p), lambda i: (0, 0), **resident),
            pl.BlockSpec((1, H1p), lambda i: (0, 0), **resident),
            pl.BlockSpec((H1p, H2p), lambda i: (0, 0), **resident),
            pl.BlockSpec((1, H2p), lambda i: (0, 0), **resident),
            pl.BlockSpec((H2p, Dop), lambda i: (0, 0), **resident),
            pl.BlockSpec((1, Dop), lambda i: (0, 0), **resident),
        ],
        out_specs=pl.BlockSpec((block_batch, D_out), lambda i: (i, 0)),  # narrow
        compiler_params=pltpu.CompilerParams(
            dimension_semantics=("parallel",),
            vmem_limit_bytes=vmem_limit,
        ),
        cost_estimate=cost,
    )(x, w1p, b1p, w2p, b2p, w3p, b3p)

    return {"period": out[:, 0:1], "uncertainty": out[:, 1:2]}


def init_params(key, input_dim):
    """Deterministic init mimicking PyTorch Linear default (uniform +/- 1/sqrt(fan_in))."""
    h1 = max(input_dim // 2, 1)
    h2 = max(input_dim // 4, 1)
    d_out = 2
    keys = jax.random.split(key, 6)

    def linear(kw, kb, fan_in, fan_out):
        lim = 1.0 / jnp.sqrt(jnp.float32(fan_in))
        w = jax.random.uniform(kw, (fan_in, fan_out), jnp.float32, -lim, lim)
        b = jax.random.uniform(kb, (fan_out,), jnp.float32, -lim, lim)
        return w, b

    w1, b1 = linear(keys[0], keys[1], input_dim, h1)
    w2, b2 = linear(keys[2], keys[3], h1, h2)
    w3, b3 = linear(keys[4], keys[5], h2, d_out)
    return w1, b1, w2, b2, w3, b3


def reference_forward(x, params):
    w1, b1, w2, b2, w3, b3 = params
    h = jnp.maximum(x @ w1 + b1, 0.0)
    h = jnp.maximum(h @ w2 + b2, 0.0)
    y = h @ w3 + b3
    return {"period": jnp.abs(y[:, 0:1]), "uncertainty": jnp.abs(y[:, 1:2])}


if __name__ == "__main__":
    batch, input_dim = 8, 32

    key = jax.random.PRNGKey(0)
    kx, kp = jax.random.split(key)
    x = jax.random.normal(kx, (batch, input_dim), jnp.float32)
    params = init_params(kp, input_dim)

    ref = reference_forward(x, params)

    # f32 weights: exact-path check.
    out_f32 = period_detection_head_forward(x, params, compute_dtype=jnp.float32)
    out_f32 = jax.block_until_ready(out_f32)
    assert out_f32["period"].shape == (batch, 1)
    assert out_f32["uncertainty"].shape == (batch, 1)
    assert jnp.allclose(out_f32["period"], ref["period"], atol=1e-4, rtol=1e-4)
    assert jnp.allclose(out_f32["uncertainty"], ref["uncertainty"], atol=1e-4, rtol=1e-4)

    # Default path: bf16 weights, f32 accumulation/biases -> looser tolerance.
    out_bf16 = period_detection_head_forward(x, params)
    out_bf16 = jax.block_until_ready(out_bf16)
    assert out_bf16["period"].shape == (batch, 1)
    assert out_bf16["uncertainty"].shape == (batch, 1)
    assert jnp.allclose(out_bf16["period"], ref["period"], atol=1e-1, rtol=1e-1)
    assert jnp.allclose(out_bf16["uncertainty"], ref["uncertainty"], atol=1e-1, rtol=1e-1)

    print("KERNEL_OK")
</pallas_src>

<mosaic_0001>
module attributes {stable_mosaic.version = 11 : i64} {
  func.func @_period_head_kernel(%arg0: i32, %arg1: memref<8x32xf32, #tpu.memory_space<vmem>>, %arg2: memref<32x128xf32, #tpu.memory_space<vmem>>, %arg3: memref<1x128xf32, #tpu.memory_space<vmem>>, %arg4: memref<128x128xf32, #tpu.memory_space<vmem>>, %arg5: memref<1x128xf32, #tpu.memory_space<vmem>>, %arg6: memref<128x128xf32, #tpu.memory_space<vmem>>, %arg7: memref<1x128xf32, #tpu.memory_space<vmem>>, %arg8: memref<8x2xf32, #tpu.memory_space<vmem>>) attributes {dimension_semantics = [#tpu.dimension_semantics<parallel>], iteration_bounds = array<i64: 1>, scalar_prefetch = 0 : i64, scratch_operands = 0 : i64, tpu.core_type = #tpu.core_type<tc>, window_params = [{transform_indices = @transform_0, window_bounds = array<i64: 8, 32>}, {pipeline_mode = #tpu.pipeline_mode<synchronous>, transform_indices = @transform_1, window_bounds = array<i64: 32, 128>}, {pipeline_mode = #tpu.pipeline_mode<synchronous>, transform_indices = @transform_2, window_bounds = array<i64: 1, 128>}, {pipeline_mode = #tpu.pipeline_mode<synchronous>, transform_indices = @transform_3, window_bounds = array<i64: 128, 128>}, {pipeline_mode = #tpu.pipeline_mode<synchronous>, transform_indices = @transform_4, window_bounds = array<i64: 1, 128>}, {pipeline_mode = #tpu.pipeline_mode<synchronous>, transform_indices = @transform_5, window_bounds = array<i64: 128, 128>}, {pipeline_mode = #tpu.pipeline_mode<synchronous>, transform_indices = @transform_6, window_bounds = array<i64: 1, 128>}, {transform_indices = @transform_7, window_bounds = array<i64: 8, 2>}]} {
    %c0 = arith.constant 0 : index
    %c0_0 = arith.constant 0 : index
    %0 = vector.load %arg1[%c0, %c0_0] : memref<8x32xf32, #tpu.memory_space<vmem>>, vector<8x32xf32>
    %c0_1 = arith.constant 0 : index
    %c0_2 = arith.constant 0 : index
    %1 = vector.load %arg2[%c0_1, %c0_2] : memref<32x128xf32, #tpu.memory_space<vmem>>, vector<32x128xf32>
    %cst = arith.constant dense<0.000000e+00> : vector<8x128xf32>
    %2 = tpu.matmul %0, %1, %cst {dimension_numbers = #tpu.dot_dimension_numbers<[1], [0], [0], [1], [0, 0, 1, 1], [], []>} : vector<8x32xf32>, vector<32x128xf32>, vector<8x128xf32> -> vector<8x128xf32>
    %c0_3 = arith.constant 0 : index
    %c0_4 = arith.constant 0 : index
    %3 = vector.load %arg3[%c0_3, %c0_4] : memref<1x128xf32, #tpu.memory_space<vmem>>, vector<1x128xf32>
    %4 = vector.broadcast %3 : vector<1x128xf32> to vector<8x128xf32>
    %5 = arith.addf %2, %4 : vector<8x128xf32>
    %cst_5 = arith.constant 0.000000e+00 : f32
    %6 = vector.broadcast %cst_5 : f32 to vector<8x128xf32>
    %7 = arith.maximumf %5, %6 : vector<8x128xf32>
    %c0_6 = arith.constant 0 : index
    %c0_7 = arith.constant 0 : index
    %8 = vector.load %arg4[%c0_6, %c0_7] : memref<128x128xf32, #tpu.memory_space<vmem>>, vector<128x128xf32>
    %cst_8 = arith.constant dense<0.000000e+00> : vector<8x128xf32>
    %9 = tpu.matmul %7, %8, %cst_8 {dimension_numbers = #tpu.dot_dimension_numbers<[1], [0], [0], [1], [0, 0, 1, 1], [], []>} : vector<8x128xf32>, vector<128x128xf32>, vector<8x128xf32> -> vector<8x128xf32>
    %c0_9 = arith.constant 0 : index
    %c0_10 = arith.constant 0 : index
    %10 = vector.load %arg5[%c0_9, %c0_10] : memref<1x128xf32, #tpu.memory_space<vmem>>, vector<1x128xf32>
    %11 = vector.broadcast %10 : vector<1x128xf32> to vector<8x128xf32>
    %12 = arith.addf %9, %11 : vector<8x128xf32>
    %cst_11 = arith.constant 0.000000e+00 : f32
    %13 = vector.broadcast %cst_11 : f32 to vector<8x128xf32>
    %14 = arith.maximumf %12, %13 : vector<8x128xf32>
    %c0_12 = arith.constant 0 : index
    %c0_13 = arith.constant 0 : index
    %15 = vector.load %arg6[%c0_12, %c0_13] : memref<128x128xf32, #tpu.memory_space<vmem>>, vector<128x128xf32>
    %cst_14 = arith.constant dense<0.000000e+00> : vector<8x128xf32>
    %16 = tpu.matmul %14, %15, %cst_14 {dimension_numbers = #tpu.dot_dimension_numbers<[1], [0], [0], [1], [0, 0, 1, 1], [], []>} : vector<8x128xf32>, vector<128x128xf32>, vector<8x128xf32> -> vector<8x128xf32>
    %c0_15 = arith.constant 0 : index
    %c0_16 = arith.constant 0 : index
    %17 = vector.load %arg7[%c0_15, %c0_16] : memref<1x128xf32, #tpu.memory_space<vmem>>, vector<1x128xf32>
    %18 = vector.broadcast %17 : vector<1x128xf32> to vector<8x128xf32>
    %19 = arith.addf %16, %18 : vector<8x128xf32>
    %20 = vector.extract_strided_slice %19 {offsets = [0, 0], sizes = [8, 2], strides = [1, 1]} : vector<8x128xf32> to vector<8x2xf32>
    %21 = math.absf %20 : vector<8x2xf32>
    %c0_17 = arith.constant 0 : index
    %c0_18 = arith.constant 0 : index
    %22 = vector.load %arg8[%c0_17, %c0_18] : memref<8x2xf32, #tpu.memory_space<vmem>>, vector<8x2xf32>
    tpu.vector_store %arg8[%c0_17, %c0_18], %21 {strides = array<i32>} : memref<8x2xf32, #tpu.memory_space<vmem>>, vector<8x2xf32>,
    return
  }
  func.func @transform_0(%arg0: i32) -> (i32, i32) {
    %c0_i32 = arith.constant 0 : i32
    %c0_i32_0 = arith.constant 0 : i32
    return %arg0, %c0_i32 : i32, i32
  }
  func.func @transform_1(%arg0: i32) -> (i32, i32) {
    %c0_i32 = arith.constant 0 : i32
    %c0_i32_0 = arith.constant 0 : i32
    %c0_i32_1 = arith.constant 0 : i32
    return %c0_i32, %c0_i32_0 : i32, i32
  }
  func.func @transform_2(%arg0: i32) -> (i32, i32) {
    %c0_i32 = arith.constant 0 : i32
    %c0_i32_0 = arith.constant 0 : i32
    %c0_i32_1 = arith.constant 0 : i32
    return %c0_i32, %c0_i32_0 : i32, i32
  }
  func.func @transform_3(%arg0: i32) -> (i32, i32) {
    %c0_i32 = arith.constant 0 : i32
    %c0_i32_0 = arith.constant 0 : i32
    %c0_i32_1 = arith.constant 0 : i32
    return %c0_i32, %c0_i32_0 : i32, i32
  }
  func.func @transform_4(%arg0: i32) -> (i32, i32) {
    %c0_i32 = arith.constant 0 : i32
    %c0_i32_0 = arith.constant 0 : i32
    %c0_i32_1 = arith.constant 0 : i32
    return %c0_i32, %c0_i32_0 : i32, i32
  }
  func.func @transform_5(%arg0: i32) -> (i32, i32) {
    %c0_i32 = arith.constant 0 : i32
    %c0_i32_0 = arith.constant 0 : i32
    %c0_i32_1 = arith.constant 0 : i32
    return %c0_i32, %c0_i32_0 : i32, i32
  }
  func.func @transform_6(%arg0: i32) -> (i32, i32) {
    %c0_i32 = arith.constant 0 : i32
    %c0_i32_0 = arith.constant 0 : i32
    %c0_i32_1 = arith.constant 0 : i32
    return %c0_i32, %c0_i32_0 : i32, i32
  }
  func.func @transform_7(%arg0: i32) -> (i32, i32) {
    %c0_i32 = arith.constant 0 : i32
    %c0_i32_0 = arith.constant 0 : i32
    return %arg0, %c0_i32 : i32, i32
  }
}

</mosaic_0001>

<llo_original>
// kernel: tpu_custom_call.1
$region0: #{tpu_custom_call.1}
  #allocation0 [shape = 'u32[]', space=smem, size = 0x4, offset = 0x4, fixed_abs, tag = 'smem constant byte address 0x4 - core index']
  #allocation1 [shape = 'u32[144,128]{1,0:T(1,128)}', space=vmem, size = 0x12000, scoped, tag = 'internal scratch']
  %s0 = inlined_call_operand.hbm [shape: f32[8,32], index: 0, kind: input, shape index: {}]
  %s1 = inlined_call_operand.hbm [shape: f32[32,128], index: 1, kind: input, shape index: {}]
  %s2 = inlined_call_operand.vmem [shape: f32[1,128], index: 2, kind: input, shape index: {}]
  %s3 = inlined_call_operand.hbm [shape: f32[128,128], index: 3, kind: input, shape index: {}]
  %s4 = inlined_call_operand.vmem [shape: f32[1,128], index: 4, kind: input, shape index: {}]
  %s5 = inlined_call_operand.hbm [shape: f32[128,128], index: 5, kind: input, shape index: {}]
  %s6 = inlined_call_operand.vmem [shape: f32[1,128], index: 6, kind: input, shape index: {}]
  %s7 = inlined_call_operand.vmem [shape: f32[8,2], index: 7, kind: output, shape index: {}]
  %s8 = sld [smem:[#allocation0]]
  $region54: #{tpu_custom_call.1} parent=0
    _
  %s10 = ssub.s32 1, %s8
  %s11 = scalar_select 0, %s10, %s8
  $region1: #{tpu_custom_call.1} parent=0
    #allocation2 [shape = 'u8[4096]{0}', space=vmem, size = 0x1000, scoped, tag = 'input window, operand 0, single buffered']
    #allocation3 [shape = 's32[1]{0}', space=sflag, size = 0x4, scoped, tag = 'scoped memory for tpu_custom_call.1']
    #allocation4 [shape = 'u8[16384]{0}', space=vmem, size = 0x4000, scoped, tag = 'input window, operand 1, single buffered']
    #allocation5 [shape = 's32[1]{0}', space=sflag, size = 0x4, scoped, tag = 'scoped memory for tpu_custom_call.1']
    #allocation6 [shape = 'u8[65536]{0}', space=vmem, size = 0x10000, scoped, tag = 'input window, operand 3, single buffered']
    #allocation7 [shape = 'u8[65536]{0}', space=vmem, size = 0x10000, scoped, tag = 'input window, operand 5, single buffered']
    #allocation8 [shape = 's32[1]{0}', space=sflag, size = 0x4, scoped, tag = 'scoped memory for tpu_custom_call.1']
    %12 = vsyncpa [#allocation3], 0
    %13 = vsyncpa [#allocation5], 0
    %14 = vsyncpa [#allocation8], 0
    // Predicated region
    $region2: #{tpu_custom_call.1} parent=1 // pred_check
      _
    $region3: #{tpu_custom_call.1} parent=1 // pred_check_branch
      %16 = sbr.rel (0) target = $region5
    $region4: #{tpu_custom_call.1} parent=1 // pred_region
      %s18 = ssub.s32 128, 128
      %19 = vsyncadd [#allocation3], %s18
      %s21 = sshll.u32 [#allocation2], 4
      %s22 = int_to_ptr.vmem [resolvable:$true] %s21
      %24 = dma.hbm_to_vmem [thread:$0]  %s0, 128, %s22, [#allocation3]
    $region5: #{tpu_custom_call.1} parent=1 // pred_fallthru
      _
    // Predicated region
    $region6: #{tpu_custom_call.1} parent=1 // pred_check
      _
    $region7: #{tpu_custom_call.1} parent=1 // pred_check_branch
      %26 = sbr.rel (0) target = $region9
    $region8: #{tpu_custom_call.1} parent=1 // pred_region
      %s28 = ssub.s32 512, 512
      %29 = vsyncadd [#allocation5], %s28
      %s30 = sshll.u32 [#allocation4], 4
      %s31 = int_to_ptr.vmem [resolvable:$true] %s30
      %36 = dma.hbm_to_vmem [thread:$0]  %s1, 512, %s31, [#allocation5], 128, 128, 8
    $region9: #{tpu_custom_call.1} parent=1 // pred_fallthru
      _
    // Predicated region
    $region10: #{tpu_custom_call.1} parent=1 // pred_check
      _
    $region11: #{tpu_custom_call.1} parent=1 // pred_check_branch
      %38 = sbr.rel (0) target = $region13
    $region12: #{tpu_custom_call.1} parent=1 // pred_region
      _
    $region13: #{tpu_custom_call.1} parent=1 // pred_fallthru
      _
    // Predicated region
    $region14: #{tpu_custom_call.1} parent=1 // pred_check
      _
    $region15: #{tpu_custom_call.1} parent=1 // pred_check_branch
      %40 = sbr.rel (0) target = $region17
    $region16: #{tpu_custom_call.1} parent=1 // pred_region
      %s42 = ssub.s32 2048, 2048
      %43 = vsyncadd [#allocation5], %s42
      %s44 = sshll.u32 [#allocation6], 4
      %s45 = int_to_ptr.vmem [resolvable:$true] %s44
      %50 = dma.hbm_to_vmem [thread:$0]  %s3, 2048, %s45, [#allocation5], 128, 128, 8
    $region17: #{tpu_custom_call.1} parent=1 // pred_fallthru
      _
    // Predicated region
    $region18: #{tpu_custom_call.1} parent=1 // pred_check
      _
    $region19: #{tpu_custom_call.1} parent=1 // pred_check_branch
      %52 = sbr.rel (0) target = $region21
    $region20: #{tpu_custom_call.1} parent=1 // pred_region
      _
    $region21: #{tpu_custom_call.1} parent=1 // pred_fallthru
      _
    // Predicated region
    $region22: #{tpu_custom_call.1} parent=1 // pred_check
      _
    $region23: #{tpu_custom_call.1} parent=1 // pred_check_branch
      %54 = sbr.rel (0) target = $region25
    $region24: #{tpu_custom_call.1} parent=1 // pred_region
      %s56 = ssub.s32 2048, 2048
      %57 = vsyncadd [#allocation8], %s56
      %s58 = sshll.u32 [#allocation7], 4
      %s59 = int_to_ptr.vmem [resolvable:$true] %s58
      %64 = dma.hbm_to_vmem [thread:$0]  %s5, 2048, %s59, [#allocation8], 128, 128, 8
    $region25: #{tpu_custom_call.1} parent=1 // pred_fallthru
      _
    // Predicated region
    $region26: #{tpu_custom_call.1} parent=1 // pred_check
      _
    $region27: #{tpu_custom_call.1} parent=1 // pred_check_branch
      %66 = sbr.rel (0) target = $region29
    $region28: #{tpu_custom_call.1} parent=1 // pred_region
      _
    $region29: #{tpu_custom_call.1} parent=1 // pred_fallthru
      _
    // Predicated region
    $region30: #{tpu_custom_call.1} parent=1 // pred_check
      _
    $region31: #{tpu_custom_call.1} parent=1 // pred_check_branch
      %68 = sbr.rel (0) target = $region33
    $region32: #{tpu_custom_call.1} parent=1 // pred_region
      %69 = dma.done [#allocation3], 128
    $region33: #{tpu_custom_call.1} parent=1 // pred_fallthru
      _
    // Predicated region
    $region34: #{tpu_custom_call.1} parent=1 // pred_check
      _
    $region35: #{tpu_custom_call.1} parent=1 // pred_check_branch
      %71 = sbr.rel (0) target = $region37
    $region36: #{tpu_custom_call.1} parent=1 // pred_region
      %72 = dma.done [#allocation5], 512
    $region37: #{tpu_custom_call.1} parent=1 // pred_fallthru
      _
    // Predicated region
    $region38: #{tpu_custom_call.1} parent=1 // pred_check
      _
    $region39: #{tpu_custom_call.1} parent=1 // pred_check_branch
      %74 = sbr.rel (0) target = $region41
    $region40: #{tpu_custom_call.1} parent=1 // pred_region
      %75 = dma.done [#allocation5], 2048
    $region41: #{tpu_custom_call.1} parent=1 // pred_fallthru
      _
    // Predicated region
    $region42: #{tpu_custom_call.1} parent=1 // pred_check
      _
    $region43: #{tpu_custom_call.1} parent=1 // pred_check_branch
      %77 = sbr.rel (0) target = $region45
    $region44: #{tpu_custom_call.1} parent=1 // pred_region
      %78 = dma.done [#allocation8], 2048
    $region45: #{tpu_custom_call.1} parent=1 // pred_fallthru
      _
    %v79 = vld [vmem:[#allocation2] sm:$0xff]
    %v80 = vld [vmem:[#allocation4] sm:$0xff]
    %v81 = vld [vmem:[#allocation4 + $0x8] sm:$0xff]
    %v82 = vld [vmem:[#allocation4 + $0x10] sm:$0xff]
    %v83 = vld [vmem:[#allocation4 + $0x18] sm:$0xff]
    %v84 = vld [vmem:[%s2] sm:$0x1]
    %v86 = vlaneseq
    %v87 = vshrl.u32 %v86, 7
    %v88 = vsub.s32 0, %v87
    %v89 = vrot.slane %v84, %v88
    %vm91 = vcmask 261120
    %v93 = vsel %vm91, %v79, 0
    %95 = vmatprep.subr.mxu0 0.0
    %96 = vmatpush1.msra.mxu0 0.0
    %97 = vmatprep.subr.mxu0 0.0
    %98 = vmatpush1.msra.mxu0 0.0
    %99 = vmatprep.subr.mxu0 0.0
    %100 = vmatpush1.msra.mxu0 0.0
    %101 = vmatprep.subr.mxu0 0.0
    %102 = vmatpush1.msra.mxu0 0.0
    %103 = vmatprep.subr.mxu0 0.0
    %104 = vmatpush1.msra.mxu0 0.0
    %105 = vmatprep.subr.mxu0 0.0
    %106 = vmatpush1.msra.mxu0 0.0
    %107 = vmatprep.subr.mxu0 0.0
    %108 = vmatpush1.msra.mxu0 0.0
    %109 = vmatprep.subr.mxu0 0.0
    %110 = vmatpush1.msra.mxu0 0.0
    %111 = vmatprep.subr.mxu0 0.0
    %112 = vmatpush1.msra.mxu0 0.0
    %113 = vmatprep.subr.mxu0 0.0
    %114 = vmatpush1.msra.mxu0 0.0
    %115 = vmatprep.subr.mxu0 0.0
    %116 = vmatpush1.msra.mxu0 0.0
    %117 = vmatprep.subr.mxu0 0.0
    %118 = vmatpush1.msra.mxu0 0.0
    %119 = vmatprep.subr.mxu0 0.0
    %120 = vmatpush1.msra.mxu0 %v83
    %121 = vmatprep.subr.mxu0 0.0
    %122 = vmatpush1.msra.mxu0 %v82
    %123 = vmatprep.subr.mxu0 0.0
    %124 = vmatpush1.msra.mxu0 %v81
    %125 = vmatprep.subr.mxu0 0.0
    %126 = vmatpush1.msra.mxu0 %v80
    %127 = vmatprep.subr.mxu0 0.0
    %128 = vmatpush2.msra.mxu0 0.0
    %129 = vmatprep.subr.mxu0 0.0
    %130 = vmatpush2.msra.mxu0 0.0
    %131 = vmatprep.subr.mxu0 0.0
    %132 = vmatpush2.msra.mxu0 0.0
    %133 = vmatprep.subr.mxu0 0.0
    %134 = vmatpush2.msra.mxu0 0.0
    %135 = vmatprep.subr.mxu0 0.0
    %136 = vmatpush2.msra.mxu0 0.0
    %137 = vmatprep.subr.mxu0 0.0
    %138 = vmatpush2.msra.mxu0 0.0
    %139 = vmatprep.subr.mxu0 0.0
    %140 = vmatpush2.msra.mxu0 0.0
    %141 = vmatprep.subr.mxu0 0.0
    %142 = vmatpush2.msra.mxu0 0.0
    %143 = vmatprep.subr.mxu0 0.0
    %144 = vmatpush2.msra.mxu0 0.0
    %145 = vmatprep.subr.mxu0 0.0
    %146 = vmatpush2.msra.mxu0 0.0
    %147 = vmatprep.subr.mxu0 0.0
    %148 = vmatpush2.msra.mxu0 0.0
    %149 = vmatprep.subr.mxu0 0.0
    %150 = vmatpush2.msra.mxu0 0.0
    %151 = vmatprep.subr.mxu0 0.0
    %152 = vmatpush2.msra.mxu0 0.0
    %153 = vmatprep.subr.mxu0 0.0
    %154 = vmatpush2.msra.mxu0 0.0
    %155 = vmatprep.subr.mxu0 0.0
    %156 = vmatpush2.msra.mxu0 0.0
    %157 = vmatprep.subr.mxu0 0.0
    %158 = vmatpush2.msra.mxu0 0.0
    %159 = vmatprep.mubr.f32.mxu0 0.0
    %160 = vmatmul.mubr.f32.gmra.mxu0 %v93
    %v161 = vpop.f32.mrf.mxu0
    %v162 = vadd.f32 %v89, %v161
    %v163 = vpop.f32.mrf.mxu0
    %164 = vdwg.mxu0
    %v165 = vmax.f32 %v162, 0.0
    %v166 = vld [vmem:[#allocation6] sm:$0xff]
    %v167 = vld [vmem:[#allocation6 + $0x8] sm:$0xff]
    %v168 = vld [vmem:[#allocation6 + $0x10] sm:$0xff]
    %v169 = vld [vmem:[#allocation6 + $0x18] sm:$0xff]
    %v170 = vld [vmem:[#allocation6 + $0x20] sm:$0xff]
    %v171 = vld [vmem:[#allocation6 + $0x28] sm:$0xff]
    %v172 = vld [vmem:[#allocation6 + $0x30] sm:$0xff]
    %v173 = vld [vmem:[#allocation6 + $0x38] sm:$0xff]
    %v174 = vld [vmem:[#allocation6 + $0x40] sm:$0xff]
    %v175 = vld [vmem:[#allocation6 + $0x48] sm:$0xff]
    %v176 = vld [vmem:[#allocation6 + $0x50] sm:$0xff]
    %v177 = vld [vmem:[#allocation6 + $0x58] sm:$0xff]
    %v178 = vld [vmem:[#allocation6 + $0x60] sm:$0xff]
    %v179 = vld [vmem:[#allocation6 + $0x68] sm:$0xff]
    %v180 = vld [vmem:[#allocation6 + $0x70] sm:$0xff]
    %v181 = vld [vmem:[#allocation6 + $0x78] sm:$0xff]
    %v182 = vld [vmem:[%s4] sm:$0x1]
    %v184 = vlaneseq
    %v185 = vshrl.u32 %v184, 7
    %v186 = vsub.s32 0, %v185
    %v187 = vrot.slane %v182, %v186
    %189 = vmatprep.subr.mxu0 0.0
    %190 = vmatpush1.msra.mxu0 %v181
    %191 = vmatprep.subr.mxu0 0.0
    %192 = vmatpush1.msra.mxu0 %v180
    %193 = vmatprep.subr.mxu0 0.0
    %194 = vmatpush1.msra.mxu0 %v179
    %195 = vmatprep.subr.mxu0 0.0
    %196 = vmatpush1.msra.mxu0 %v178
    %197 = vmatprep.subr.mxu0 0.0
    %198 = vmatpush1.msra.mxu0 %v177
    %199 = vmatprep.subr.mxu0 0.0
    %200 = vmatpush1.msra.mxu0 %v176
    %201 = vmatprep.subr.mxu0 0.0
    %202 = vmatpush1.msra.mxu0 %v175
    %203 = vmatprep.subr.mxu0 0.0
    %204 = vmatpush1.msra.mxu0 %v174
    %205 = vmatprep.subr.mxu0 0.0
    %206 = vmatpush1.msra.mxu0 %v173
    %207 = vmatprep.subr.mxu0 0.0
    %208 = vmatpush1.msra.mxu0 %v172
    %209 = vmatprep.subr.mxu0 0.0
    %210 = vmatpush1.msra.mxu0 %v171
    %211 = vmatprep.subr.mxu0 0.0
    %212 = vmatpush1.msra.mxu0 %v170
    %213 = vmatprep.subr.mxu0 0.0
    %214 = vmatpush1.msra.mxu0 %v169
    %215 = vmatprep.subr.mxu0 0.0
    %216 = vmatpush1.msra.mxu0 %v168
    %217 = vmatprep.subr.mxu0 0.0
    %218 = vmatpush1.msra.mxu0 %v167
    %219 = vmatprep.subr.mxu0 0.0
    %220 = vmatpush1.msra.mxu0 %v166
    %221 = vmatprep.subr.mxu0 0.0
    %222 = vmatpush2.msra.mxu0 0.0
    %223 = vmatprep.subr.mxu0 0.0
    %224 = vmatpush2.msra.mxu0 0.0
    %225 = vmatprep.subr.mxu0 0.0
    %226 = vmatpush2.msra.mxu0 0.0
    %227 = vmatprep.subr.mxu0 0.0
    %228 = vmatpush2.msra.mxu0 0.0
    %229 = vmatprep.subr.mxu0 0.0
    %230 = vmatpush2.msra.mxu0 0.0
    %231 = vmatprep.subr.mxu0 0.0
    %232 = vmatpush2.msra.mxu0 0.0
    %233 = vmatprep.subr.mxu0 0.0
    %234 = vmatpush2.msra.mxu0 0.0
    %235 = vmatprep.subr.mxu0 0.0
    %236 = vmatpush2.msra.mxu0 0.0
    %237 = vmatprep.subr.mxu0 0.0
    %238 = vmatpush2.msra.mxu0 0.0
    %239 = vmatprep.subr.mxu0 0.0
    %240 = vmatpush2.msra.mxu0 0.0
    %241 = vmatprep.subr.mxu0 0.0
    %242 = vmatpush2.msra.mxu0 0.0
    %243 = vmatprep.subr.mxu0 0.0
    %244 = vmatpush2.msra.mxu0 0.0
    %245 = vmatprep.subr.mxu0 0.0
    %246 = vmatpush2.msra.mxu0 0.0
    %247 = vmatprep.subr.mxu0 0.0
    %248 = vmatpush2.msra.mxu0 0.0
    %249 = vmatprep.subr.mxu0 0.0
    %250 = vmatpush2.msra.mxu0 0.0
    %251 = vmatprep.subr.mxu0 0.0
    %252 = vmatpush2.msra.mxu0 0.0
    %253 = vmatprep.mubr.f32.mxu0 0.0
    %254 = vmatmul.mubr.f32.gmra.mxu0 %v165
    %v255 = vpop.f32.mrf.mxu0
    %v256 = vadd.f32 %v187, %v255
    %v257 = vpop.f32.mrf.mxu0
    %258 = vdwg.mxu0
    %v259 = vmax.f32 %v256, 0.0
    %v260 = vld [vmem:[#allocation7] sm:$0xff]
    %v261 = vld [vmem:[#allocation7 + $0x8] sm:$0xff]
    %v262 = vld [vmem:[#allocation7 + $0x10] sm:$0xff]
    %v263 = vld [vmem:[#allocation7 + $0x18] sm:$0xff]
    %v264 = vld [vmem:[#allocation7 + $0x20] sm:$0xff]
    %v265 = vld [vmem:[#allocation7 + $0x28] sm:$0xff]
    %v266 = vld [vmem:[#allocation7 + $0x30] sm:$0xff]
    %v267 = vld [vmem:[#allocation7 + $0x38] sm:$0xff]
    %v268 = vld [vmem:[#allocation7 + $0x40] sm:$0xff]
    %v269 = vld [vmem:[#allocation7 + $0x48] sm:$0xff]
    %v270 = vld [vmem:[#allocation7 + $0x50] sm:$0xff]
    %v271 = vld [vmem:[#allocation7 + $0x58] sm:$0xff]
    %v272 = vld [vmem:[#allocation7 + $0x60] sm:$0xff]
    %v273 = vld [vmem:[#allocation7 + $0x68] sm:$0xff]
    %v274 = vld [vmem:[#allocation7 + $0x70] sm:$0xff]
    %v275 = vld [vmem:[#allocation7 + $0x78] sm:$0xff]
    %v276 = vld [vmem:[%s6] sm:$0x1]
    %v278 = vlaneseq
    %v279 = vshrl.u32 %v278, 7
    %v280 = vsub.s32 0, %v279
    %v281 = vrot.slane %v276, %v280
    %283 = vmatprep.subr.mxu0 0.0
    %284 = vmatpush1.msra.mxu0 %v275
    %285 = vmatprep.subr.mxu0 0.0
    %286 = vmatpush1.msra.mxu0 %v274
    %287 = vmatprep.subr.mxu0 0.0
    %288 = vmatpush1.msra.mxu0 %v273
    %289 = vmatprep.subr.mxu0 0.0
    %290 = vmatpush1.msra.mxu0 %v272
    %291 = vmatprep.subr.mxu0 0.0
    %292 = vmatpush1.msra.mxu0 %v271
    %293 = vmatprep.subr.mxu0 0.0
    %294 = vmatpush1.msra.mxu0 %v270
    %295 = vmatprep.subr.mxu0 0.0
    %296 = vmatpush1.msra.mxu0 %v269
    %297 = vmatprep.subr.mxu0 0.0
    %298 = vmatpush1.msra.mxu0 %v268
    %299 = vmatprep.subr.mxu0 0.0
    %300 = vmatpush1.msra.mxu0 %v267
    %301 = vmatprep.subr.mxu0 0.0
    %302 = vmatpush1.msra.mxu0 %v266
    %303 = vmatprep.subr.mxu0 0.0
    %304 = vmatpush1.msra.mxu0 %v265
    %305 = vmatprep.subr.mxu0 0.0
    %306 = vmatpush1.msra.mxu0 %v264
    %307 = vmatprep.subr.mxu0 0.0
    %308 = vmatpush1.msra.mxu0 %v263
    %309 = vmatprep.subr.mxu0 0.0
    %310 = vmatpush1.msra.mxu0 %v262
    %311 = vmatprep.subr.mxu0 0.0
    %312 = vmatpush1.msra.mxu0 %v261
    %313 = vmatprep.subr.mxu0 0.0
    %314 = vmatpush1.msra.mxu0 %v260
    %315 = vmatprep.subr.mxu0 0.0
    %316 = vmatpush2.msra.mxu0 0.0
    %317 = vmatprep.subr.mxu0 0.0
    %318 = vmatpush2.msra.mxu0 0.0
    %319 = vmatprep.subr.mxu0 0.0
    %320 = vmatpush2.msra.mxu0 0.0
    %321 = vmatprep.subr.mxu0 0.0
    %322 = vmatpush2.msra.mxu0 0.0
    %323 = vmatprep.subr.mxu0 0.0
    %324 = vmatpush2.msra.mxu0 0.0
    %325 = vmatprep.subr.mxu0 0.0
    %326 = vmatpush2.msra.mxu0 0.0
    %327 = vmatprep.subr.mxu0 0.0
    %328 = vmatpush2.msra.mxu0 0.0
    %329 = vmatprep.subr.mxu0 0.0
    %330 = vmatpush2.msra.mxu0 0.0
    %331 = vmatprep.subr.mxu0 0.0
    %332 = vmatpush2.msra.mxu0 0.0
    %333 = vmatprep.subr.mxu0 0.0
    %334 = vmatpush2.msra.mxu0 0.0
    %335 = vmatprep.subr.mxu0 0.0
    %336 = vmatpush2.msra.mxu0 0.0
    %337 = vmatprep.subr.mxu0 0.0
    %338 = vmatpush2.msra.mxu0 0.0
    %339 = vmatprep.subr.mxu0 0.0
    %340 = vmatpush2.msra.mxu0 0.0
    %341 = vmatprep.subr.mxu0 0.0
    %342 = vmatpush2.msra.mxu0 0.0
    %343 = vmatprep.subr.mxu0 0.0
    %344 = vmatpush2.msra.mxu0 0.0
    %345 = vmatprep.subr.mxu0 0.0
    %346 = vmatpush2.msra.mxu0 0.0
    %347 = vmatprep.mubr.f32.mxu0 0.0
    %348 = vmatmul.mubr.f32.gmra.mxu0 %v259
    %v349 = vpop.f32.mrf.mxu0
    %v350 = vadd.f32 %v281, %v349
    %v351 = vpop.f32.mrf.mxu0
    %352 = vdwg.mxu0
    %v353 = vand.u32 2147483647, %v350
    %vm354 = vcmask 15360
    %355 = vst.msk [vmem:[%s7] sm:$0xff] %vm354, %v353
    // Predicated region
    $region46: #{tpu_custom_call.1} parent=1 // pred_check
      _
    $region47: #{tpu_custom_call.1} parent=1 // pred_check_branch
      %357 = sbr.rel (0) target = $region49
    $region48: #{tpu_custom_call.1} parent=1 // pred_region
      _
    $region49: #{tpu_custom_call.1} parent=1 // pred_fallthru
      _
    // Predicated region
    $region50: #{tpu_custom_call.1} parent=1 // pred_check
      _
    $region51: #{tpu_custom_call.1} parent=1 // pred_check_branch
      %359 = sbr.rel (0) target = $region53
    $region52: #{tpu_custom_call.1} parent=1 // pred_region
      _
    $region53: #{tpu_custom_call.1} parent=1 // pred_fallthru
      _
    %360 = vsyncpa [#allocation3], 1
    %361 = vsyncpa [#allocation5], 1
    %362 = vsyncpa [#allocation8], 1

</llo_original>
